<compile_context>
chip_gen: v7x
topology: tpu7x:2x2x1
jax: 0.10.0
libtpu: 0.0.40
codegen_flags: <defaults>
</compile_context>

<pallas_src>
import functools

import jax
import jax.numpy as jnp
import numpy as np
from jax.experimental import pallas as pl
from jax.experimental.pallas import tpu as pltpu

# ---------------- static config (matches module __init__ args) ----------------
H_DIM = 32
Z_DIM = 4
C_DIM = 3
NUM_LAYERS = 2
NUM_STEPS = 10

BATCH = 2
SET_SIZE = 8
T_STEP = 3

LANES = 128  # slab width (one lane tile)


def _rup8(n):
    return ((n + 7) // 8) * 8


# ---- weight-slab row offsets (8-sublane aligned blocks inside one (R,128) slab) ----
_W0_R = 0                                # (C_DIM, 2H)  set-enc layer 0 -> lanes [H, 2H)
_W1_R = _W0_R + _rup8(C_DIM)             # (2H, 2H)     shared set-enc layer (block at [H,2H-1]^2)
_WZ_R = _W1_R + 2 * H_DIM                # (Z_DIM, 2H)  proj_z -> lanes [0, H)
_WBLK_R = _WZ_R + _rup8(Z_DIM)           # (2H, 2H)     fused [wbz ; wbc]
_WO_R = _WBLK_R + 2 * H_DIM              # (2H, 2H)     mlp_out linear (cols [H,2H) zero)
_WS_R = _WO_R + 2 * H_DIM                # (2H, Z_DIM)  proj_score (rows [H,2H) zero)
_WSLAB_ROWS = _WS_R + 2 * H_DIM          # = 272

# ---- bias / LayerNorm slab row indices (one (8,128) tile) ----
_B0, _B1, _BZ, _LNG, _LNB, _BBLK, _BO, _BS = range(8)
_VSLAB_ROWS = 8


# ------------------------------ Pallas kernel ---------------------------------
def _score_kernel(tb, set_size, h_dim, z_dim, c_dim, num_layers,
                  z_ref, c_ref, trow_ref, w_ref, v_ref, out_ref):
    f32 = jnp.float32
    h2 = 2 * h_dim
    relu = lambda x: jnp.maximum(x, 0.0)
    dot = lambda a, b: jnp.dot(a, b, preferred_element_type=f32)

    # ---- static views into the two packed parameter slabs (no extra DMAs) ----
    w0 = w_ref[_W0_R:_W0_R + c_dim, 0:h2]        # (c_dim, 2h)
    w1 = w_ref[_W1_R:_W1_R + h2, 0:h2]           # (2h, 2h)
    wz = w_ref[_WZ_R:_WZ_R + z_dim, 0:h2]        # (z_dim, 2h)
    wblk = w_ref[_WBLK_R:_WBLK_R + h2, 0:h2]     # (2h, 2h) = [wbz ; wbc]
    wo = w_ref[_WO_R:_WO_R + h2, 0:h2]           # (2h, 2h), cols [h,2h) zero
    ws = w_ref[_WS_R:_WS_R + h2, 0:z_dim]        # (2h, z_dim), rows [h,2h) zero

    b0 = v_ref[_B0:_B0 + 1, 0:h2]
    b1 = v_ref[_B1:_B1 + 1, 0:h2]
    bz = v_ref[_BZ:_BZ + 1, 0:h2]
    g2 = v_ref[_LNG:_LNG + 1, 0:h2]              # [ln_z gamma | ln_c gamma]
    be2 = v_ref[_LNB:_LNB + 1, 0:h2]             # [ln_z beta  | ln_c beta ]
    bblk = v_ref[_BBLK:_BBLK + 1, 0:h2]          # bbz + bbc
    bo = v_ref[_BO:_BO + 1, 0:h2]                # lanes [h,2h) zero
    bs = v_ref[_BS:_BS + 1, 0:z_dim]

    # ---- SetEncoder: features land in lanes [h, 2h), last lane stays 0 ----
    ns = tb * set_size
    h = dot(c_ref[...], w0) + b0                 # (tb*S, 2h)
    if num_layers > 1:
        h = relu(h)                              # [ReLU]*(nl-1) collapses (idempotent)
        for _ in range(num_layers - 1):          # shared-weight Linear, as written in torch
            h = dot(h, w1) + b1
    # mean over the set axis as an MXU matmul with an in-kernel generated matrix
    r = jax.lax.broadcasted_iota(jnp.int32, (tb, ns), 0)
    k = jax.lax.broadcasted_iota(jnp.int32, (tb, ns), 1)
    mmat = jnp.where((k >= r * set_size) & (k < (r + 1) * set_size),
                     1.0 / set_size, 0.0)

    # ---- build X = [ proj_z(z) | SetEncoder(c) ] on disjoint lane halves ----
    lane = jax.lax.broadcasted_iota(jnp.int32, (tb, h2), 1)
    z_wide = dot(z_ref[...], wz) + bz            # (tb, 2h): [ z_h | 0 ]
    X = (z_wide + dot(mmat, h)
         + jnp.where(lane == h2 - 1, float(set_size), 0.0))   # [ z_h | c_enc ]

    # ---- last ResidualBlock: both LayerNorms evaluated jointly per lane-half ----
    left = lane < h_dim

    def half_mean(v):
        s_l = jnp.sum(jnp.where(left, v, 0.0), axis=-1, keepdims=True)
        s_r = jnp.sum(jnp.where(left, 0.0, v), axis=-1, keepdims=True)
        return jnp.where(left, s_l, s_r) * (1.0 / h_dim)

    mu = half_mean(X)
    d = X - mu
    var = half_mean(d * d)
    a = relu(d * jax.lax.rsqrt(var + 1e-5) * g2 + be2)         # (tb, 2h)

    # single fused block matmul; t contribution arrives pre-folded as a bias row
    s = dot(a, wblk) + bblk + trow_ref[...]                    # (tb, 2h)
    blk = relu(dot(relu(s), wo) + bo) + z_wide                 # (tb, 2h), right half 0

    out_ref[...] = dot(blk, ws) + bs                           # (tb, z_dim)


# ------------------------------ parameter setup --------------------------------
def init_params(key):
    ks = jax.random.split(key, 18)
    n = lambda k, shape, s=0.1: (s * jax.random.normal(k, shape)).astype(jnp.float32)
    hm1 = H_DIM - 1
    p = dict(
        emb=n(ks[0], (NUM_STEPS + 1, H_DIM)),
        wz=n(ks[1], (Z_DIM, H_DIM)), bz=n(ks[2], (1, H_DIM)),
        ws=n(ks[3], (H_DIM, Z_DIM)), bs=n(ks[4], (1, Z_DIM)),
        w0=n(ks[5], (C_DIM, hm1)), b0=n(ks[6], (1, hm1)),
        w1=n(ks[7], (hm1, hm1)), b1=n(ks[8], (1, hm1)),
        wt=n(ks[9], (H_DIM, 2 * H_DIM)), bt=n(ks[10], (1, 2 * H_DIM)),
        lnzg=jnp.ones((1, H_DIM), jnp.float32), lnzb=jnp.zeros((1, H_DIM), jnp.float32),
        lncg=jnp.ones((1, H_DIM), jnp.float32), lncb=jnp.zeros((1, H_DIM), jnp.float32),
        wbz=n(ks[11], (H_DIM, 2 * H_DIM)), bbz=n(ks[12], (1, 2 * H_DIM)),
        wbc=n(ks[13], (H_DIM, 2 * H_DIM)), bbc=n(ks[14], (1, 2 * H_DIM)),
        wo=n(ks[15], (2 * H_DIM, H_DIM)), bo=n(ks[16], (1, H_DIM)),
    )
    return p


def pack_params(p):
    """One-time packing of all parameters into 2 slabs + the folded proj_t table."""
    H, H2, hm1 = H_DIM, 2 * H_DIM, H_DIM - 1
    w = np.zeros((_WSLAB_ROWS, LANES), np.float32)
    # SetEncoder weights, writing their output into lanes [H, 2H); last lane stays 0.
    w[_W0_R:_W0_R + C_DIM, H:H + hm1] = np.asarray(p["w0"])
    w[_W1_R + H:_W1_R + H + hm1, H:H + hm1] = np.asarray(p["w1"])
    # proj_z writes lanes [0, H).
    w[_WZ_R:_WZ_R + Z_DIM, 0:H] = np.asarray(p["wz"])
    # fused residual-block weight [wbz ; wbc]
    w[_WBLK_R:_WBLK_R + H, 0:H2] = np.asarray(p["wbz"])
    w[_WBLK_R + H:_WBLK_R + H2, 0:H2] = np.asarray(p["wbc"])
    w[_WO_R:_WO_R + H2, 0:H] = np.asarray(p["wo"])
    w[_WS_R:_WS_R + H, 0:Z_DIM] = np.asarray(p["ws"])

    v = np.zeros((_VSLAB_ROWS, LANES), np.float32)
    v[_B0, H:H + hm1] = np.asarray(p["b0"])[0]
    v[_B1, H:H + hm1] = np.asarray(p["b1"])[0]
    v[_BZ, 0:H] = np.asarray(p["bz"])[0]
    v[_LNG, 0:H] = np.asarray(p["lnzg"])[0]
    v[_LNG, H:H2] = np.asarray(p["lncg"])[0]
    v[_LNB, 0:H] = np.asarray(p["lnzb"])[0]
    v[_LNB, H:H2] = np.asarray(p["lncb"])[0]
    v[_BBLK, 0:H2] = np.asarray(p["bbz"] + p["bbc"])[0]
    v[_BO, 0:H] = np.asarray(p["bo"])[0]
    v[_BS, 0:Z_DIM] = np.asarray(p["bs"])[0]

    # fold proj_t into the embedding table: row t of (emb @ wt + bt)
    emb_fused = np.asarray(p["emb"]) @ np.asarray(p["wt"]) + np.asarray(p["bt"])

    return dict(wslab=jnp.asarray(w), vslab=jnp.asarray(v),
                emb_fused=jnp.asarray(emb_fused.astype(np.float32)))


# --------------------------------- wrapper -------------------------------------
@jax.jit
def score_function_forward(packed, z, t, c):
    B = z.shape[0]
    S = c.shape[1]

    tb = min(128, _rup8(B))                 # batch tile (sublane-aligned, <=128 rows)
    b_pad = ((B + tb - 1) // tb) * tb
    grid = (b_pad // tb,)

    zp = jnp.pad(z.astype(jnp.float32), ((0, b_pad - B), (0, 0)))
    cp = jnp.pad(c.astype(jnp.float32), ((0, b_pad - B), (0, 0), (0, 0)))
    cp = cp.reshape(b_pad * S, C_DIM)
    trow = jnp.take(packed["emb_fused"], t, axis=0).reshape(1, 2 * H_DIM)

    kernel = functools.partial(_score_kernel, tb, S, H_DIM, Z_DIM, C_DIM, NUM_LAYERS)
    out = pl.pallas_call(
        kernel,
        out_shape=jax.ShapeDtypeStruct((b_pad, Z_DIM), jnp.float32),
        grid=grid,
        in_specs=[
            pl.BlockSpec((tb, Z_DIM), lambda i: (i, 0)),
            pl.BlockSpec((tb * S, C_DIM), lambda i: (i, 0)),
            pl.BlockSpec((1, 2 * H_DIM), lambda i: (0, 0)),
            pl.BlockSpec((_WSLAB_ROWS, LANES), lambda i: (0, 0)),
            pl.BlockSpec((_VSLAB_ROWS, LANES), lambda i: (0, 0)),
        ],
        out_specs=pl.BlockSpec((tb, Z_DIM), lambda i: (i, 0)),
        compiler_params=pltpu.CompilerParams(
            dimension_semantics=("parallel",)),
    )(zp, cp, trow, packed["wslab"], packed["vslab"])
    return out[:B]


# ------------------------------ pure-JAX reference -----------------------------
def reference_forward(p, z, t, c):
    relu = lambda x: jnp.maximum(x, 0.0)

    def ln(x, g, b, eps=1e-5):
        mu = x.mean(-1, keepdims=True)
        var = ((x - mu) ** 2).mean(-1, keepdims=True)
        return (x - mu) / jnp.sqrt(var + eps) * g + b

    B, S, _ = c.shape
    # SetEncoder, exact torch layer ordering: Linear, [ReLU]*(nl-1), [shared Linear]*(nl-1)
    h = c @ p["w0"] + p["b0"]
    if NUM_LAYERS > 1:
        h = relu(h)
        for _ in range(NUM_LAYERS - 1):
            h = h @ p["w1"] + p["b1"]
    h = h.mean(axis=1)
    c_enc = jnp.concatenate([h, jnp.full((B, 1), float(S), jnp.float32)], axis=1)

    z_h = z @ p["wz"] + p["bz"]
    t_h = p["emb"][t][None, :]

    # only blocks[-1] matters (torch loop reassigns score from the original inputs)
    t_b = t_h @ p["wt"] + p["bt"]
    z_b = relu(ln(z_h, p["lnzg"], p["lnzb"])) @ p["wbz"] + p["bbz"]
    c_b = relu(ln(c_enc, p["lncg"], p["lncb"])) @ p["wbc"] + p["bbc"]
    blk = relu(relu(z_b + t_b + c_b) @ p["wo"] + p["bo"]) + z_h
    return blk @ p["ws"] + p["bs"]


if __name__ == "__main__":
    key = jax.random.PRNGKey(0)
    kp, kz, kc = jax.random.split(key, 3)

    params = init_params(kp)
    packed = pack_params(params)

    z = jax.random.normal(kz, (BATCH, Z_DIM), jnp.float32)
    c = jax.random.normal(kc, (BATCH, SET_SIZE, C_DIM), jnp.float32)
    t = jnp.int32(T_STEP)

    out = score_function_forward(packed, z, t, c)
    out = jax.block_until_ready(out)

    ref = reference_forward(params, z, t, c)
    np.testing.assert_allclose(np.asarray(out), np.asarray(ref), rtol=1e-5, atol=1e-5)
    print("KERNEL_OK")
</pallas_src>

<mosaic_0001>
module attributes {stable_mosaic.version = 11 : i64} {
  func.func @_score_kernel(%arg0: i32, %arg1: memref<8x4xf32, #tpu.memory_space<vmem>>, %arg2: memref<64x3xf32, #tpu.memory_space<vmem>>, %arg3: memref<1x64xf32, #tpu.memory_space<vmem>>, %arg4: memref<272x128xf32, #tpu.memory_space<vmem>>, %arg5: memref<8x128xf32, #tpu.memory_space<vmem>>, %arg6: memref<8x4xf32, #tpu.memory_space<vmem>>) attributes {dimension_semantics = [#tpu.dimension_semantics<parallel>], iteration_bounds = array<i64: 1>, scalar_prefetch = 0 : i64, scratch_operands = 0 : i64, tpu.core_type = #tpu.core_type<tc>, window_params = [{transform_indices = @transform_0, window_bounds = array<i64: 8, 4>}, {transform_indices = @transform_1, window_bounds = array<i64: 64, 3>}, {pipeline_mode = #tpu.pipeline_mode<synchronous>, transform_indices = @transform_2, window_bounds = array<i64: 1, 64>}, {pipeline_mode = #tpu.pipeline_mode<synchronous>, transform_indices = @transform_3, window_bounds = array<i64: 272, 128>}, {pipeline_mode = #tpu.pipeline_mode<synchronous>, transform_indices = @transform_4, window_bounds = array<i64: 8, 128>}, {transform_indices = @transform_5, window_bounds = array<i64: 8, 4>}]} {
    %c0 = arith.constant 0 : index
    %c0_0 = arith.constant 0 : index
    %0 = vector.load %arg4[%c0, %c0_0] : memref<272x128xf32, #tpu.memory_space<vmem>>, vector<3x64xf32>
    %c8 = arith.constant 8 : index
    %c0_1 = arith.constant 0 : index
    %1 = vector.load %arg4[%c8, %c0_1] : memref<272x128xf32, #tpu.memory_space<vmem>>, vector<64x64xf32>
    %c72 = arith.constant 72 : index
    %c0_2 = arith.constant 0 : index
    %2 = vector.load %arg4[%c72, %c0_2] : memref<272x128xf32, #tpu.memory_space<vmem>>, vector<4x64xf32>
    %c80 = arith.constant 80 : index
    %c0_3 = arith.constant 0 : index
    %3 = vector.load %arg4[%c80, %c0_3] : memref<272x128xf32, #tpu.memory_space<vmem>>, vector<64x64xf32>
    %c144 = arith.constant 144 : index
    %c0_4 = arith.constant 0 : index
    %4 = vector.load %arg4[%c144, %c0_4] : memref<272x128xf32, #tpu.memory_space<vmem>>, vector<64x64xf32>
    %c208 = arith.constant 208 : index
    %c0_5 = arith.constant 0 : index
    %5 = vector.load %arg4[%c208, %c0_5] : memref<272x128xf32, #tpu.memory_space<vmem>>, vector<64x4xf32>
    %c0_6 = arith.constant 0 : index
    %c0_7 = arith.constant 0 : index
    %6 = vector.load %arg5[%c0_6, %c0_7] : memref<8x128xf32, #tpu.memory_space<vmem>>, vector<1x64xf32>
    %c1 = arith.constant 1 : index
    %c0_8 = arith.constant 0 : index
    %7 = vector.load %arg5[%c1, %c0_8] : memref<8x128xf32, #tpu.memory_space<vmem>>, vector<1x64xf32>
    %c2 = arith.constant 2 : index
    %c0_9 = arith.constant 0 : index
    %8 = vector.load %arg5[%c2, %c0_9] : memref<8x128xf32, #tpu.memory_space<vmem>>, vector<1x64xf32>
    %c3 = arith.constant 3 : index
    %c0_10 = arith.constant 0 : index
    %9 = vector.load %arg5[%c3, %c0_10] : memref<8x128xf32, #tpu.memory_space<vmem>>, vector<1x64xf32>
    %c4 = arith.constant 4 : index
    %c0_11 = arith.constant 0 : index
    %10 = vector.load %arg5[%c4, %c0_11] : memref<8x128xf32, #tpu.memory_space<vmem>>, vector<1x64xf32>
    %c5 = arith.constant 5 : index
    %c0_12 = arith.constant 0 : index
    %11 = vector.load %arg5[%c5, %c0_12] : memref<8x128xf32, #tpu.memory_space<vmem>>, vector<1x64xf32>
    %c6 = arith.constant 6 : index
    %c0_13 = arith.constant 0 : index
    %12 = vector.load %arg5[%c6, %c0_13] : memref<8x128xf32, #tpu.memory_space<vmem>>, vector<1x64xf32>
    %c7 = arith.constant 7 : index
    %c0_14 = arith.constant 0 : index
    %13 = vector.load %arg5[%c7, %c0_14] : memref<8x128xf32, #tpu.memory_space<vmem>>, vector<1x4xf32>
    %c0_15 = arith.constant 0 : index
    %c0_16 = arith.constant 0 : index
    %14 = vector.load %arg2[%c0_15, %c0_16] : memref<64x3xf32, #tpu.memory_space<vmem>>, vector<64x3xf32>
    %cst = arith.constant dense<0.000000e+00> : vector<64x64xf32>
    %15 = tpu.matmul %14, %0, %cst {dimension_numbers = #tpu.dot_dimension_numbers<[1], [0], [0], [1], [0, 0, 1, 1], [], []>} : vector<64x3xf32>, vector<3x64xf32>, vector<64x64xf32> -> vector<64x64xf32>
    %16 = vector.broadcast %6 : vector<1x64xf32> to vector<64x64xf32>
    %17 = arith.addf %15, %16 : vector<64x64xf32>
    %cst_17 = arith.constant 0.000000e+00 : f32
    %18 = vector.broadcast %cst_17 : f32 to vector<64x64xf32>
    %19 = arith.maximumf %17, %18 : vector<64x64xf32>
    %cst_18 = arith.constant dense<0.000000e+00> : vector<64x64xf32>
    %20 = tpu.matmul %19, %1, %cst_18 {dimension_numbers = #tpu.dot_dimension_numbers<[1], [0], [0], [1], [0, 0, 1, 1], [], []>} : vector<64x64xf32>, vector<64x64xf32>, vector<64x64xf32> -> vector<64x64xf32>
    %21 = vector.broadcast %7 : vector<1x64xf32> to vector<64x64xf32>
    %22 = arith.addf %20, %21 : vector<64x64xf32>
    %23 = tpu.iota {dimensions = array<i32: 0>} : vector<8x64xi32>
    %24 = tpu.iota {dimensions = array<i32: 1>} : vector<8x64xi32>
    %c8_i32 = arith.constant 8 : i32
    %25 = vector.broadcast %c8_i32 : i32 to vector<8x64xi32>
    %26 = arith.muli %23, %25 : vector<8x64xi32>
    %27 = arith.cmpi sge, %24, %26 : vector<8x64xi32>
    %c1_i32 = arith.constant 1 : i32
    %28 = vector.broadcast %c1_i32 : i32 to vector<8x64xi32>
    %29 = arith.addi %23, %28 : vector<8x64xi32>
    %c8_i32_19 = arith.constant 8 : i32
    %30 = vector.broadcast %c8_i32_19 : i32 to vector<8x64xi32>
    %31 = arith.muli %29, %30 : vector<8x64xi32>
    %32 = arith.cmpi slt, %24, %31 : vector<8x64xi32>
    %33 = arith.andi %27, %32 : vector<8x64xi1>
    %cst_20 = arith.constant 1.250000e-01 : f32
    %cst_21 = arith.constant 0.000000e+00 : f32
    %34 = vector.broadcast %cst_20 : f32 to vector<8x64xf32>
    %35 = vector.broadcast %cst_21 : f32 to vector<8x64xf32>
    %36 = arith.select %33, %34, %35 : vector<8x64xi1>, vector<8x64xf32>
    %37 = tpu.iota {dimensions = array<i32: 1>} : vector<8x64xi32>
    %c0_22 = arith.constant 0 : index
    %c0_23 = arith.constant 0 : index
    %38 = vector.load %arg1[%c0_22, %c0_23] : memref<8x4xf32, #tpu.memory_space<vmem>>, vector<8x4xf32>
    %cst_24 = arith.constant dense<0.000000e+00> : vector<8x64xf32>
    %39 = tpu.matmul %38, %2, %cst_24 {dimension_numbers = #tpu.dot_dimension_numbers<[1], [0], [0], [1], [0, 0, 1, 1], [], []>} : vector<8x4xf32>, vector<4x64xf32>, vector<8x64xf32> -> vector<8x64xf32>
    %40 = vector.broadcast %8 : vector<1x64xf32> to vector<8x64xf32>
    %41 = arith.addf %39, %40 : vector<8x64xf32>
    %cst_25 = arith.constant dense<0.000000e+00> : vector<8x64xf32>
    %42 = tpu.matmul %36, %22, %cst_25 {dimension_numbers = #tpu.dot_dimension_numbers<[1], [0], [0], [1], [0, 0, 1, 1], [], []>} : vector<8x64xf32>, vector<64x64xf32>, vector<8x64xf32> -> vector<8x64xf32>
    %43 = arith.addf %41, %42 : vector<8x64xf32>
    %c63_i32 = arith.constant 63 : i32
    %44 = vector.broadcast %c63_i32 : i32 to vector<8x64xi32>
    %45 = arith.cmpi eq, %37, %44 : vector<8x64xi32>
    %cst_26 = arith.constant 8.000000e+00 : f32
    %cst_27 = arith.constant 0.000000e+00 : f32
    %46 = vector.broadcast %cst_26 : f32 to vector<8x64xf32>
    %47 = vector.broadcast %cst_27 : f32 to vector<8x64xf32>
    %48 = arith.select %45, %46, %47 : vector<8x64xi1>, vector<8x64xf32>
    %49 = arith.addf %43, %48 : vector<8x64xf32>
    %c32_i32 = arith.constant 32 : i32
    %50 = vector.broadcast %c32_i32 : i32 to vector<8x64xi32>
    %51 = arith.cmpi slt, %37, %50 : vector<8x64xi32>
    %cst_28 = arith.constant 0.000000e+00 : f32
    %52 = vector.broadcast %cst_28 : f32 to vector<8x64xf32>
    %53 = arith.select %51, %49, %52 : vector<8x64xi1>, vector<8x64xf32>
    %cst_29 = arith.constant dense<0.000000e+00> : vector<8xf32>
    %54 = vector.multi_reduction <add>, %53, %cst_29 [1] : vector<8x64xf32> to vector<8xf32>
    %55 = vector.shape_cast %54 : vector<8xf32> to vector<8x1xf32>
    %cst_30 = arith.constant 0.000000e+00 : f32
    %56 = vector.broadcast %cst_30 : f32 to vector<8x64xf32>
    %57 = arith.select %51, %56, %49 : vector<8x64xi1>, vector<8x64xf32>
    %cst_31 = arith.constant dense<0.000000e+00> : vector<8xf32>
    %58 = vector.multi_reduction <add>, %57, %cst_31 [1] : vector<8x64xf32> to vector<8xf32>
    %59 = vector.shape_cast %58 : vector<8xf32> to vector<8x1xf32>
    %60 = vector.shape_cast %55 : vector<8x1xf32> to vector<8x1xf32>
    %61 = vector.broadcast %60 : vector<8x1xf32> to vector<8x64xf32>
    %62 = vector.shape_cast %59 : vector<8x1xf32> to vector<8x1xf32>
    %63 = vector.broadcast %62 : vector<8x1xf32> to vector<8x64xf32>
    %64 = arith.select %51, %61, %63 : vector<8x64xi1>, vector<8x64xf32>
    %cst_32 = arith.constant 3.125000e-02 : f32
    %65 = vector.broadcast %cst_32 : f32 to vector<8x64xf32>
    %66 = arith.mulf %64, %65 : vector<8x64xf32>
    %67 = arith.subf %49, %66 : vector<8x64xf32>
    %68 = arith.mulf %67, %67 : vector<8x64xf32>
    %cst_33 = arith.constant 0.000000e+00 : f32
    %69 = vector.broadcast %cst_33 : f32 to vector<8x64xf32>
    %70 = arith.select %51, %68, %69 : vector<8x64xi1>, vector<8x64xf32>
    %cst_34 = arith.constant dense<0.000000e+00> : vector<8xf32>
    %71 = vector.multi_reduction <add>, %70, %cst_34 [1] : vector<8x64xf32> to vector<8xf32>
    %72 = vector.shape_cast %71 : vector<8xf32> to vector<8x1xf32>
    %cst_35 = arith.constant 0.000000e+00 : f32
    %73 = vector.broadcast %cst_35 : f32 to vector<8x64xf32>
    %74 = arith.select %51, %73, %68 : vector<8x64xi1>, vector<8x64xf32>
    %cst_36 = arith.constant dense<0.000000e+00> : vector<8xf32>
    %75 = vector.multi_reduction <add>, %74, %cst_36 [1] : vector<8x64xf32> to vector<8xf32>
    %76 = vector.shape_cast %75 : vector<8xf32> to vector<8x1xf32>
    %77 = vector.shape_cast %72 : vector<8x1xf32> to vector<8x1xf32>
    %78 = vector.broadcast %77 : vector<8x1xf32> to vector<8x64xf32>
    %79 = vector.shape_cast %76 : vector<8x1xf32> to vector<8x1xf32>
    %80 = vector.broadcast %79 : vector<8x1xf32> to vector<8x64xf32>
    %81 = arith.select %51, %78, %80 : vector<8x64xi1>, vector<8x64xf32>
    %cst_37 = arith.constant 3.125000e-02 : f32
    %82 = vector.broadcast %cst_37 : f32 to vector<8x64xf32>
    %83 = arith.mulf %81, %82 : vector<8x64xf32>
    %cst_38 = arith.constant 9.99999974E-6 : f32
    %84 = vector.broadcast %cst_38 : f32 to vector<8x64xf32>
    %85 = arith.addf %83, %84 : vector<8x64xf32>
    %86 = math.rsqrt %85 : vector<8x64xf32>
    %87 = arith.mulf %67, %86 : vector<8x64xf32>
    %88 = vector.broadcast %9 : vector<1x64xf32> to vector<8x64xf32>
    %89 = arith.mulf %87, %88 : vector<8x64xf32>
    %90 = vector.broadcast %10 : vector<1x64xf32> to vector<8x64xf32>
    %91 = arith.addf %89, %90 : vector<8x64xf32>
    %cst_39 = arith.constant 0.000000e+00 : f32
    %92 = vector.broadcast %cst_39 : f32 to vector<8x64xf32>
    %93 = arith.maximumf %91, %92 : vector<8x64xf32>
    %cst_40 = arith.constant dense<0.000000e+00> : vector<8x64xf32>
    %94 = tpu.matmul %93, %3, %cst_40 {dimension_numbers = #tpu.dot_dimension_numbers<[1], [0], [0], [1], [0, 0, 1, 1], [], []>} : vector<8x64xf32>, vector<64x64xf32>, vector<8x64xf32> -> vector<8x64xf32>
    %95 = vector.broadcast %11 : vector<1x64xf32> to vector<8x64xf32>
    %96 = arith.addf %94, %95 : vector<8x64xf32>
    %c0_41 = arith.constant 0 : index
    %c0_42 = arith.constant 0 : index
    %97 = vector.load %arg3[%c0_41, %c0_42] : memref<1x64xf32, #tpu.memory_space<vmem>>, vector<1x64xf32>
    %98 = vector.broadcast %97 : vector<1x64xf32> to vector<8x64xf32>
    %99 = arith.addf %96, %98 : vector<8x64xf32>
    %cst_43 = arith.constant 0.000000e+00 : f32
    %100 = vector.broadcast %cst_43 : f32 to vector<8x64xf32>
    %101 = arith.maximumf %99, %100 : vector<8x64xf32>
    %cst_44 = arith.constant dense<0.000000e+00> : vector<8x64xf32>
    %102 = tpu.matmul %101, %4, %cst_44 {dimension_numbers = #tpu.dot_dimension_numbers<[1], [0], [0], [1], [0, 0, 1, 1], [], []>} : vector<8x64xf32>, vector<64x64xf32>, vector<8x64xf32> -> vector<8x64xf32>
    %103 = vector.broadcast %12 : vector<1x64xf32> to vector<8x64xf32>
    %104 = arith.addf %102, %103 : vector<8x64xf32>
    %cst_45 = arith.constant 0.000000e+00 : f32
    %105 = vector.broadcast %cst_45 : f32 to vector<8x64xf32>
    %106 = arith.maximumf %104, %105 : vector<8x64xf32>
    %107 = arith.addf %106, %41 : vector<8x64xf32>
    %cst_46 = arith.constant dense<0.000000e+00> : vector<8x4xf32>
    %108 = tpu.matmul %107, %5, %cst_46 {dimension_numbers = #tpu.dot_dimension_numbers<[1], [0], [0], [1], [0, 0, 1, 1], [], []>} : vector<8x64xf32>, vector<64x4xf32>, vector<8x4xf32> -> vector<8x4xf32>
    %109 = vector.broadcast %13 : vector<1x4xf32> to vector<8x4xf32>
    %110 = arith.addf %108, %109 : vector<8x4xf32>
    %c0_47 = arith.constant 0 : index
    %c0_48 = arith.constant 0 : index
    %111 = vector.load %arg6[%c0_47, %c0_48] : memref<8x4xf32, #tpu.memory_space<vmem>>, vector<8x4xf32>
    tpu.vector_store %arg6[%c0_47, %c0_48], %110 {strides = array<i32>} : memref<8x4xf32, #tpu.memory_space<vmem>>, vector<8x4xf32>,
    return
  }
  func.func @transform_0(%arg0: i32) -> (i32, i32) {
    %c0_i32 = arith.constant 0 : i32
    %c0_i32_0 = arith.constant 0 : i32
    return %arg0, %c0_i32 : i32, i32
  }
  func.func @transform_1(%arg0: i32) -> (i32, i32) {
    %c0_i32 = arith.constant 0 : i32
    %c0_i32_0 = arith.constant 0 : i32
    return %arg0, %c0_i32 : i32, i32
  }
  func.func @transform_2(%arg0: i32) -> (i32, i32) {
    %c0_i32 = arith.constant 0 : i32
    %c0_i32_0 = arith.constant 0 : i32
    %c0_i32_1 = arith.constant 0 : i32
    return %c0_i32, %c0_i32_0 : i32, i32
  }
  func.func @transform_3(%arg0: i32) -> (i32, i32) {
    %c0_i32 = arith.constant 0 : i32
    %c0_i32_0 = arith.constant 0 : i32
    %c0_i32_1 = arith.constant 0 : i32
    return %c0_i32, %c0_i32_0 : i32, i32
  }
  func.func @transform_4(%arg0: i32) -> (i32, i32) {
    %c0_i32 = arith.constant 0 : i32
    %c0_i32_0 = arith.constant 0 : i32
    %c0_i32_1 = arith.constant 0 : i32
    return %c0_i32, %c0_i32_0 : i32, i32
  }
  func.func @transform_5(%arg0: i32) -> (i32, i32) {
    %c0_i32 = arith.constant 0 : i32
    %c0_i32_0 = arith.constant 0 : i32
    return %arg0, %c0_i32 : i32, i32
  }
}

</mosaic_0001>

<llo_original>
// kernel: score_function_forward.1
$region0: #{score_function_forward.1}
  #allocation0 [shape = 'u32[]', space=smem, size = 0x4, offset = 0x4, fixed_abs, tag = 'smem constant byte address 0x4 - core index']
  #allocation1 [shape = 'u32[144,128]{1,0:T(1,128)}', space=vmem, size = 0x12000, scoped, tag = 'internal scratch']
  %s0 = inlined_call_operand.vmem [shape: f32[8,4], index: 0, kind: input, shape index: {}]
  %s1 = inlined_call_operand.vmem [shape: f32[64,3], index: 1, kind: input, shape index: {}]
  %s2 = inlined_call_operand.vmem [shape: f32[1,64], index: 2, kind: input, shape index: {}]
  %s3 = inlined_call_operand.hbm [shape: f32[272,128], index: 3, kind: input, shape index: {}]
  %s4 = inlined_call_operand.vmem [shape: f32[8,128], index: 4, kind: input, shape index: {}]
  %s5 = inlined_call_operand.vmem [shape: f32[8,4], index: 5, kind: output, shape index: {}]
  %s6 = sld [smem:[#allocation0]]
  $region34: #{score_function_forward.1} parent=0
    _
  %s8 = ssub.s32 1, %s6
  %s9 = scalar_select 0, %s8, %s6
  $region1: #{score_function_forward.1} parent=0
    #allocation2 [shape = 'u8[139264]{0}', space=vmem, size = 0x22000, scoped, tag = 'input window, operand 3, single buffered']
    #allocation3 [shape = 's32[1]{0}', space=sflag, size = 0x4, scoped, tag = 'scoped memory for score_function_forward.1']
    %10 = vsyncpa [#allocation3], 0
    // Predicated region
    $region2: #{score_function_forward.1} parent=1 // pred_check
      _
    $region3: #{score_function_forward.1} parent=1 // pred_check_branch
      %12 = sbr.rel (0) target = $region5
    $region4: #{score_function_forward.1} parent=1 // pred_region
      _
    $region5: #{score_function_forward.1} parent=1 // pred_fallthru
      _
    // Predicated region
    $region6: #{score_function_forward.1} parent=1 // pred_check
      _
    $region7: #{score_function_forward.1} parent=1 // pred_check_branch
      %14 = sbr.rel (0) target = $region9
    $region8: #{score_function_forward.1} parent=1 // pred_region
      _
    $region9: #{score_function_forward.1} parent=1 // pred_fallthru
      _
    // Predicated region
    $region10: #{score_function_forward.1} parent=1 // pred_check
      _
    $region11: #{score_function_forward.1} parent=1 // pred_check_branch
      %16 = sbr.rel (0) target = $region13
    $region12: #{score_function_forward.1} parent=1 // pred_region
      _
    $region13: #{score_function_forward.1} parent=1 // pred_fallthru
      _
    // Predicated region
    $region14: #{score_function_forward.1} parent=1 // pred_check
      _
    $region15: #{score_function_forward.1} parent=1 // pred_check_branch
      %18 = sbr.rel (0) target = $region17
    $region16: #{score_function_forward.1} parent=1 // pred_region
      %s20 = ssub.s32 4352, 4352
      %21 = vsyncadd [#allocation3], %s20
      %s22 = sshll.u32 [#allocation2], 4
      %s23 = int_to_ptr.vmem [resolvable:$true] %s22
      %28 = dma.hbm_to_vmem [thread:$0]  %s3, 4352, %s23, [#allocation3], 128, 128, 8
    $region17: #{score_function_forward.1} parent=1 // pred_fallthru
      _
    // Predicated region
    $region18: #{score_function_forward.1} parent=1 // pred_check
      _
    $region19: #{score_function_forward.1} parent=1 // pred_check_branch
      %30 = sbr.rel (0) target = $region21
    $region20: #{score_function_forward.1} parent=1 // pred_region
      _
    $region21: #{score_function_forward.1} parent=1 // pred_fallthru
      _
    // Predicated region
    $region22: #{score_function_forward.1} parent=1 // pred_check
      _
    $region23: #{score_function_forward.1} parent=1 // pred_check_branch
      %32 = sbr.rel (0) target = $region25
    $region24: #{score_function_forward.1} parent=1 // pred_region
      %33 = dma.done [#allocation3], 4352
    $region25: #{score_function_forward.1} parent=1 // pred_fallthru
      _
    %v34 = vld [vmem:[#allocation2] sm:$0x7]
    %v35 = vld [vmem:[#allocation2 + $0x8] sm:$0xff]
    %v36 = vld [vmem:[#allocation2 + $0x10] sm:$0xff]
    %v37 = vld [vmem:[#allocation2 + $0x18] sm:$0xff]
    %v38 = vld [vmem:[#allocation2 + $0x20] sm:$0xff]
    %v39 = vld [vmem:[#allocation2 + $0x28] sm:$0xff]
    %v40 = vld [vmem:[#allocation2 + $0x30] sm:$0xff]
    %v41 = vld [vmem:[#allocation2 + $0x38] sm:$0xff]
    %v42 = vld [vmem:[#allocation2 + $0x40] sm:$0xff]
    %v43 = vld [vmem:[#allocation2 + $0x48] sm:$0xf]
    %v44 = vld [vmem:[#allocation2 + $0x50] sm:$0xff]
    %v45 = vld [vmem:[#allocation2 + $0x58] sm:$0xff]
    %v46 = vld [vmem:[#allocation2 + $0x60] sm:$0xff]
    %v47 = vld [vmem:[#allocation2 + $0x68] sm:$0xff]
    %v48 = vld [vmem:[#allocation2 + $0x70] sm:$0xff]
    %v49 = vld [vmem:[#allocation2 + $0x78] sm:$0xff]
    %v50 = vld [vmem:[#allocation2 + $0x80] sm:$0xff]
    %v51 = vld [vmem:[#allocation2 + $0x88] sm:$0xff]
    %v52 = vld [vmem:[#allocation2 + $0x90] sm:$0xff]
    %v53 = vld [vmem:[#allocation2 + $0x98] sm:$0xff]
    %v54 = vld [vmem:[#allocation2 + $0xa0] sm:$0xff]
    %v55 = vld [vmem:[#allocation2 + $0xa8] sm:$0xff]
    %v56 = vld [vmem:[#allocation2 + $0xb0] sm:$0xff]
    %v57 = vld [vmem:[#allocation2 + $0xb8] sm:$0xff]
    %v58 = vld [vmem:[#allocation2 + $0xc0] sm:$0xff]
    %v59 = vld [vmem:[#allocation2 + $0xc8] sm:$0xff]
    %v60 = vld [vmem:[#allocation2 + $0xd0] sm:$0xff]
    %v61 = vld [vmem:[#allocation2 + $0xd8] sm:$0xff]
    %v62 = vld [vmem:[#allocation2 + $0xe0] sm:$0xff]
    %v63 = vld [vmem:[#allocation2 + $0xe8] sm:$0xff]
    %v64 = vld [vmem:[#allocation2 + $0xf0] sm:$0xff]
    %v65 = vld [vmem:[#allocation2 + $0xf8] sm:$0xff]
    %v66 = vld [vmem:[#allocation2 + $0x100] sm:$0xff]
    %v67 = vld [vmem:[#allocation2 + $0x108] sm:$0xff]
    %v68 = vld [vmem:[%s4] sm:$0x1]
    %v69 = vld [vmem:[%s4 + $0x1] sm:$0x1]
    %v70 = vld [vmem:[%s4 + $0x2] sm:$0x1]
    %v71 = vld [vmem:[%s4 + $0x3] sm:$0x1]
    %v72 = vld [vmem:[%s4 + $0x4] sm:$0x1]
    %v73 = vld [vmem:[%s4 + $0x5] sm:$0x1]
    %v74 = vld [vmem:[%s4 + $0x6] sm:$0x1]
    %v75 = vld [vmem:[%s4 + $0x7] sm:$0x1]
    %v76 = vld [vmem:[%s1] sm:$0xff]
    %v77 = vld [vmem:[%s1 + $0x8] sm:$0xff]
    %v78 = vld [vmem:[%s1 + $0x10] sm:$0xff]
    %v79 = vld [vmem:[%s1 + $0x18] sm:$0xff]
    %v80 = vld [vmem:[%s1 + $0x20] sm:$0xff]
    %v81 = vld [vmem:[%s1 + $0x28] sm:$0xff]
    %v82 = vld [vmem:[%s1 + $0x30] sm:$0xff]
    %v83 = vld [vmem:[%s1 + $0x38] sm:$0xff]
    %v84 = vlaneseq
    %v85 = vshrl.u32 %v84, 7
    %v86 = vsub.s32 0, %v85
    %v87 = vrot.slane %v68, %v86
    %vm88 = vcmask 23552
    %v90 = vsel %vm88, %v76, 0
    %v93 = vsel %vm88, %v77, 0
    %v96 = vsel %vm88, %v78, 0
    %v99 = vsel %vm88, %v79, 0
    %v102 = vsel %vm88, %v80, 0
    %v105 = vsel %vm88, %v81, 0
    %v108 = vsel %vm88, %v82, 0
    %v111 = vsel %vm88, %v83, 0
    %vm113 = vcmask 1042432
    %v115 = vsel %vm113, %v34, 0
    %117 = vmatprep.subr.mxu0 0.0
    %118 = vmatpush1.msra.mxu0 %v115
    %119 = vmatprep.subr.mxu0 0.0
    %120 = vmatpush1.msra.mxu0 0.0
    %121 = vmatprep.subr.mxu0 0.0
    %122 = vmatpush1.msra.mxu0 0.0
    %123 = vmatprep.subr.mxu0 0.0
    %124 = vmatpush1.msra.mxu0 0.0
    %125 = vmatprep.subr.mxu0 0.0
    %126 = vmatpush1.msra.mxu0 0.0
    %127 = vmatprep.subr.mxu0 0.0
    %128 = vmatpush1.msra.mxu0 0.0
    %129 = vmatprep.subr.mxu0 0.0
    %130 = vmatpush1.msra.mxu0 0.0
    %131 = vmatprep.subr.mxu0 0.0
    %132 = vmatpush1.msra.mxu0 0.0
    %133 = vmatprep.subr.mxu0 0.0
    %134 = vmatpush1.msra.mxu0 0.0
    %135 = vmatprep.subr.mxu0 0.0
    %136 = vmatpush1.msra.mxu0 0.0
    %137 = vmatprep.subr.mxu0 0.0
    %138 = vmatpush1.msra.mxu0 0.0
    %139 = vmatprep.subr.mxu0 0.0
    %140 = vmatpush1.msra.mxu0 0.0
    %141 = vmatprep.subr.mxu0 0.0
    %142 = vmatpush1.msra.mxu0 0.0
    %143 = vmatprep.subr.mxu0 0.0
    %144 = vmatpush1.msra.mxu0 0.0
    %145 = vmatprep.subr.mxu0 0.0
    %146 = vmatpush1.msra.mxu0 0.0
    %147 = vmatprep.subr.mxu0 0.0
    %148 = vmatpush1.msra.mxu0 0.0
    %149 = vmatprep.subr.mxu0 0.0
    %150 = vmatpush1.msra.mxu0 0.0
    %151 = vmatprep.subr.mxu0 0.0
    %152 = vmatpush1.msra.mxu0 0.0
    %153 = vmatprep.subr.mxu0 0.0
    %154 = vmatpush1.msra.mxu0 0.0
    %155 = vmatprep.subr.mxu0 0.0
    %156 = vmatpush1.msra.mxu0 0.0
    %157 = vmatprep.subr.mxu0 0.0
    %158 = vmatpush1.msra.mxu0 0.0
    %159 = vmatprep.subr.mxu0 0.0
    %160 = vmatpush1.msra.mxu0 0.0
    %161 = vmatprep.subr.mxu0 0.0
    %162 = vmatpush1.msra.mxu0 0.0
    %163 = vmatprep.subr.mxu0 0.0
    %164 = vmatpush1.msra.mxu0 0.0
    %165 = vmatprep.subr.mxu0 0.0
    %166 = vmatpush1.msra.mxu0 0.0
    %167 = vmatprep.subr.mxu0 0.0
    %168 = vmatpush1.msra.mxu0 0.0
    %169 = vmatprep.subr.mxu0 0.0
    %170 = vmatpush1.msra.mxu0 0.0
    %171 = vmatprep.subr.mxu0 0.0
    %172 = vmatpush1.msra.mxu0 0.0
    %173 = vmatprep.subr.mxu0 0.0
    %174 = vmatpush1.msra.mxu0 0.0
    %175 = vmatprep.subr.mxu0 0.0
    %176 = vmatpush1.msra.mxu0 0.0
    %177 = vmatprep.subr.mxu0 0.0
    %178 = vmatpush1.msra.mxu0 0.0
    %179 = vmatprep.subr.mxu0 0.0
    %180 = vmatpush1.msra.mxu0 0.0
    %181 = vmatprep.mubr.f32.mxu0 0.0
    %182 = vmatmul.mubr.f32.gmra.mrb[0].mxu0 %v90
    %v183 = vpop.f32.mrb[0].mxu0
    %v184 = vadd.f32 %v87, %v183
    %v185 = vpop.f32.mrb[0].mxu0
    %186 = vmatprep.mubr.f32.mxu0 0.0
    %187 = vmatmul.mubr.f32.gmra.mrb[0].mxu0 %v93
    %v188 = vpop.f32.mrb[0].mxu0
    %v189 = vadd.f32 %v87, %v188
    %v190 = vpop.f32.mrb[0].mxu0
    %191 = vmatprep.mubr.f32.mxu0 0.0
    %192 = vmatmul.mubr.f32.gmra.mrb[0].mxu0 %v96
    %v193 = vpop.f32.mrb[0].mxu0
    %v194 = vadd.f32 %v87, %v193
    %v195 = vpop.f32.mrb[0].mxu0
    %196 = vmatprep.mubr.f32.mxu0 0.0
    %197 = vmatmul.mubr.f32.gmra.mrb[0].mxu0 %v99
    %v198 = vpop.f32.mrb[0].mxu0
    %v199 = vadd.f32 %v87, %v198
    %v200 = vpop.f32.mrb[0].mxu0
    %201 = vmatprep.mubr.f32.mxu0 0.0
    %202 = vmatmul.mubr.f32.gmra.mrb[0].mxu0 %v102
    %v203 = vpop.f32.mrb[0].mxu0
    %v204 = vadd.f32 %v87, %v203
    %v205 = vpop.f32.mrb[0].mxu0
    %206 = vmatprep.mubr.f32.mxu0 0.0
    %207 = vmatmul.mubr.f32.gmra.mrb[0].mxu0 %v105
    %v208 = vpop.f32.mrb[0].mxu0
    %v209 = vadd.f32 %v87, %v208
    %v210 = vpop.f32.mrb[0].mxu0
    %211 = vmatprep.mubr.f32.mxu0 0.0
    %212 = vmatmul.mubr.f32.gmra.mrb[0].mxu0 %v108
    %v213 = vpop.f32.mrb[0].mxu0
    %v214 = vadd.f32 %v87, %v213
    %v215 = vpop.f32.mrb[0].mxu0
    %216 = vmatprep.mubr.f32.mxu0 0.0
    %217 = vmatmul.mubr.f32.gmra.mrb[0].mxu0 %v111
    %v218 = vpop.f32.mrb[0].mxu0
    %v219 = vadd.f32 %v87, %v218
    %v220 = vpop.f32.mrb[0].mxu0
    %221 = vdwg.mxu0
    %v222 = vmax.f32 %v184, 0.0
    %v223 = vmax.f32 %v189, 0.0
    %v224 = vmax.f32 %v194, 0.0
    %v225 = vmax.f32 %v199, 0.0
    %v226 = vmax.f32 %v204, 0.0
    %v227 = vmax.f32 %v209, 0.0
    %v228 = vmax.f32 %v214, 0.0
    %v229 = vmax.f32 %v219, 0.0
    %v230 = vlaneseq
    %v231 = vshrl.u32 %v230, 7
    %v232 = vsub.s32 0, %v231
    %v233 = vrot.slane %v69, %v232
    %vm234 = vcmask 523264
    %v236 = vsel %vm234, %v222, 0
    %v239 = vsel %vm234, %v223, 0
    %v242 = vsel %vm234, %v224, 0
    %v245 = vsel %vm234, %v225, 0
    %v248 = vsel %vm234, %v226, 0
    %v251 = vsel %vm234, %v227, 0
    %v254 = vsel %vm234, %v228, 0
    %v257 = vsel %vm234, %v229, 0
    %259 = vmatprep.subr.mxu0 0.0
    %260 = vmatpush1.msra.mxu0 %v35
    %261 = vmatprep.subr.mxu0 0.0
    %262 = vmatpush1.msra.mxu0 %v36
    %263 = vmatprep.subr.mxu0 0.0
    %264 = vmatpush1.msra.mxu0 %v37
    %265 = vmatprep.subr.mxu0 0.0
    %266 = vmatpush1.msra.mxu0 %v38
    %267 = vmatprep.subr.mxu0 0.0
    %268 = vmatpush1.msra.mxu0 %v39
    %269 = vmatprep.subr.mxu0 0.0
    %270 = vmatpush1.msra.mxu0 %v40
    %271 = vmatprep.subr.mxu0 0.0
    %272 = vmatpush1.msra.mxu0 %v41
    %273 = vmatprep.subr.mxu0 0.0
    %274 = vmatpush1.msra.mxu0 %v42
    %275 = vmatprep.subr.mxu0 0.0
    %276 = vmatpush1.msra.mxu0 0.0
    %277 = vmatprep.subr.mxu0 0.0
    %278 = vmatpush1.msra.mxu0 0.0
    %279 = vmatprep.subr.mxu0 0.0
    %280 = vmatpush1.msra.mxu0 0.0
    %281 = vmatprep.subr.mxu0 0.0
    %282 = vmatpush1.msra.mxu0 0.0
    %283 = vmatprep.subr.mxu0 0.0
    %284 = vmatpush1.msra.mxu0 0.0
    %285 = vmatprep.subr.mxu0 0.0
    %286 = vmatpush1.msra.mxu0 0.0
    %287 = vmatprep.subr.mxu0 0.0
    %288 = vmatpush1.msra.mxu0 0.0
    %289 = vmatprep.subr.mxu0 0.0
    %290 = vmatpush1.msra.mxu0 0.0
    %291 = vmatprep.subr.mxu0 0.0
    %292 = vmatpush1.msra.mxu0 0.0
    %293 = vmatprep.subr.mxu0 0.0
    %294 = vmatpush1.msra.mxu0 0.0
    %295 = vmatprep.subr.mxu0 0.0
    %296 = vmatpush1.msra.mxu0 0.0
    %297 = vmatprep.subr.mxu0 0.0
    %298 = vmatpush1.msra.mxu0 0.0
    %299 = vmatprep.subr.mxu0 0.0
    %300 = vmatpush1.msra.mxu0 0.0
    %301 = vmatprep.subr.mxu0 0.0
    %302 = vmatpush1.msra.mxu0 0.0
    %303 = vmatprep.subr.mxu0 0.0
    %304 = vmatpush1.msra.mxu0 0.0
    %305 = vmatprep.subr.mxu0 0.0
    %306 = vmatpush1.msra.mxu0 0.0
    %307 = vmatprep.subr.mxu0 0.0
    %308 = vmatpush1.msra.mxu0 0.0
    %309 = vmatprep.subr.mxu0 0.0
    %310 = vmatpush1.msra.mxu0 0.0
    %311 = vmatprep.subr.mxu0 0.0
    %312 = vmatpush1.msra.mxu0 0.0
    %313 = vmatprep.subr.mxu0 0.0
    %314 = vmatpush1.msra.mxu0 0.0
    %315 = vmatprep.subr.mxu0 0.0
    %316 = vmatpush1.msra.mxu0 0.0
    %317 = vmatprep.subr.mxu0 0.0
    %318 = vmatpush1.msra.mxu0 0.0
    %319 = vmatprep.subr.mxu0 0.0
    %320 = vmatpush1.msra.mxu0 0.0
    %321 = vmatprep.subr.mxu0 0.0
    %322 = vmatpush1.msra.mxu0 0.0
    %323 = vmatprep.mubr.f32.mxu0 0.0
    %324 = vmatmul.mubr.f32.gmra.mrb[0].mxu0 %v236
    %v325 = vpop.f32.mrb[0].mxu0
    %v326 = vadd.f32 %v233, %v325
    %v327 = vpop.f32.mrb[0].mxu0
    %328 = vmatprep.mubr.f32.mxu0 0.0
    %329 = vmatmul.mubr.f32.gmra.mrb[0].mxu0 %v239
    %v330 = vpop.f32.mrb[0].mxu0
    %v331 = vadd.f32 %v233, %v330
    %v332 = vpop.f32.mrb[0].mxu0
    %333 = vmatprep.mubr.f32.mxu0 0.0
    %334 = vmatmul.mubr.f32.gmra.mrb[0].mxu0 %v242
    %v335 = vpop.f32.mrb[0].mxu0
    %v336 = vadd.f32 %v233, %v335
    %v337 = vpop.f32.mrb[0].mxu0
    %338 = vmatprep.mubr.f32.mxu0 0.0
    %339 = vmatmul.mubr.f32.gmra.mrb[0].mxu0 %v245
    %v340 = vpop.f32.mrb[0].mxu0
    %v341 = vadd.f32 %v233, %v340
    %v342 = vpop.f32.mrb[0].mxu0
    %343 = vmatprep.mubr.f32.mxu0 0.0
    %344 = vmatmul.mubr.f32.gmra.mrb[0].mxu0 %v248
    %v345 = vpop.f32.mrb[0].mxu0
    %v346 = vadd.f32 %v233, %v345
    %v347 = vpop.f32.mrb[0].mxu0
    %348 = vmatprep.mubr.f32.mxu0 0.0
    %349 = vmatmul.mubr.f32.gmra.mrb[0].mxu0 %v251
    %v350 = vpop.f32.mrb[0].mxu0
    %v351 = vadd.f32 %v233, %v350
    %v352 = vpop.f32.mrb[0].mxu0
    %353 = vmatprep.mubr.f32.mxu0 0.0
    %354 = vmatmul.mubr.f32.gmra.mrb[0].mxu0 %v254
    %v355 = vpop.f32.mrb[0].mxu0
    %v356 = vadd.f32 %v233, %v355
    %v357 = vpop.f32.mrb[0].mxu0
    %358 = vmatprep.mubr.f32.mxu0 0.0
    %359 = vmatmul.mubr.f32.gmra.mrb[0].mxu0 %v257
    %v360 = vpop.f32.mrb[0].mxu0
    %v361 = vadd.f32 %v233, %v360
    %v362 = vpop.f32.mrb[0].mxu0
    %363 = vdwg.mxu0
    %v364 = vlaneseq
    %v365 = vshrl.u32 %v364, 7
    %v366 = vlaneseq
    %v367 = vand.u32 %v366, 127
    %v368 = vmul.u32 %v365, 8
    %vm369 = vcmp.ge.s32.totalorder %v367, %v368
    %v370 = vadd.s32 %v365, 1
    %v371 = vmul.u32 %v370, 8
    %vm372 = vcmp.lt.s32.totalorder %v367, %v371
    %vm373 = vmand %vm369, %vm372
    %v374 = vsel %vm373, 0.125, 0.0
    %v375 = vld [vmem:[%s0] sm:$0xff]
    %v376 = vlaneseq
    %v377 = vshrl.u32 %v376, 7
    %v378 = vsub.s32 0, %v377
    %v379 = vrot.slane %v70, %v378
    %vm380 = vcmask 31744
    %v382 = vsel %vm380, %v375, 0
    %vm384 = vcmask 1043456
    %v386 = vsel %vm384, %v43, 0
    %388 = vmatprep.subr.mxu0 0.0
    %389 = vmatpush1.msra.mxu0 %v386
    %390 = vmatprep.subr.mxu0 0.0
    %391 = vmatpush1.msra.mxu0 0.0
    %392 = vmatprep.subr.mxu0 0.0
    %393 = vmatpush1.msra.mxu0 0.0
    %394 = vmatprep.subr.mxu0 0.0
    %395 = vmatpush1.msra.mxu0 0.0
    %396 = vmatprep.subr.mxu0 0.0
    %397 = vmatpush1.msra.mxu0 0.0
    %398 = vmatprep.subr.mxu0 0.0
    %399 = vmatpush1.msra.mxu0 0.0
    %400 = vmatprep.subr.mxu0 0.0
    %401 = vmatpush1.msra.mxu0 0.0
    %402 = vmatprep.subr.mxu0 0.0
    %403 = vmatpush1.msra.mxu0 0.0
    %404 = vmatprep.subr.mxu0 0.0
    %405 = vmatpush1.msra.mxu0 0.0
    %406 = vmatprep.subr.mxu0 0.0
    %407 = vmatpush1.msra.mxu0 0.0
    %408 = vmatprep.subr.mxu0 0.0
    %409 = vmatpush1.msra.mxu0 0.0
    %410 = vmatprep.subr.mxu0 0.0
    %411 = vmatpush1.msra.mxu0 0.0
    %412 = vmatprep.subr.mxu0 0.0
    %413 = vmatpush1.msra.mxu0 0.0
    %414 = vmatprep.subr.mxu0 0.0
    %415 = vmatpush1.msra.mxu0 0.0
    %416 = vmatprep.subr.mxu0 0.0
    %417 = vmatpush1.msra.mxu0 0.0
    %418 = vmatprep.subr.mxu0 0.0
    %419 = vmatpush1.msra.mxu0 0.0
    %420 = vmatprep.subr.mxu0 0.0
    %421 = vmatpush1.msra.mxu0 0.0
    %422 = vmatprep.subr.mxu0 0.0
    %423 = vmatpush1.msra.mxu0 0.0
    %424 = vmatprep.subr.mxu0 0.0
    %425 = vmatpush1.msra.mxu0 0.0
    %426 = vmatprep.subr.mxu0 0.0
    %427 = vmatpush1.msra.mxu0 0.0
    %428 = vmatprep.subr.mxu0 0.0
    %429 = vmatpush1.msra.mxu0 0.0
    %430 = vmatprep.subr.mxu0 0.0
    %431 = vmatpush1.msra.mxu0 0.0
    %432 = vmatprep.subr.mxu0 0.0
    %433 = vmatpush1.msra.mxu0 0.0
    %434 = vmatprep.subr.mxu0 0.0
    %435 = vmatpush1.msra.mxu0 0.0
    %436 = vmatprep.subr.mxu0 0.0
    %437 = vmatpush1.msra.mxu0 0.0
    %438 = vmatprep.subr.mxu0 0.0
    %439 = vmatpush1.msra.mxu0 0.0
    %440 = vmatprep.subr.mxu0 0.0
    %441 = vmatpush1.msra.mxu0 0.0
    %442 = vmatprep.subr.mxu0 0.0
    %443 = vmatpush1.msra.mxu0 0.0
    %444 = vmatprep.subr.mxu0 0.0
    %445 = vmatpush1.msra.mxu0 0.0
    %446 = vmatprep.subr.mxu0 0.0
    %447 = vmatpush1.msra.mxu0 0.0
    %448 = vmatprep.subr.mxu0 0.0
    %449 = vmatpush1.msra.mxu0 0.0
    %450 = vmatprep.subr.mxu0 0.0
    %451 = vmatpush1.msra.mxu0 0.0
    %452 = vmatprep.mubr.f32.mxu0 0.0
    %453 = vmatmul.mubr.f32.gmra.mrb[0].mxu0 %v382
    %v454 = vpop.f32.mrb[0].mxu0
    %v455 = vadd.f32 %v379, %v454
    %v456 = vpop.f32.mrb[0].mxu0
    %457 = vdwg.mxu0
    %v459 = vsel %vm234, %v374, 0
    %461 = vmatprep.subr.mxu0 0.0
    %462 = vmatpush1.msra.mxu0 %v326
    %463 = vmatprep.subr.mxu0 0.0
    %464 = vmatpush1.msra.mxu0 %v331
    %465 = vmatprep.subr.mxu0 0.0
    %466 = vmatpush1.msra.mxu0 %v336
    %467 = vmatprep.subr.mxu0 0.0
    %468 = vmatpush1.msra.mxu0 %v341
    %469 = vmatprep.subr.mxu0 0.0
    %470 = vmatpush1.msra.mxu0 %v346
    %471 = vmatprep.subr.mxu0 0.0
    %472 = vmatpush1.msra.mxu0 %v351
    %473 = vmatprep.subr.mxu0 0.0
    %474 = vmatpush1.msra.mxu0 %v356
    %475 = vmatprep.subr.mxu0 0.0
    %476 = vmatpush1.msra.mxu0 %v361
    %477 = vmatprep.subr.mxu0 0.0
    %478 = vmatpush1.msra.mxu0 0.0
    %479 = vmatprep.subr.mxu0 0.0
    %480 = vmatpush1.msra.mxu0 0.0
    %481 = vmatprep.subr.mxu0 0.0
    %482 = vmatpush1.msra.mxu0 0.0
    %483 = vmatprep.subr.mxu0 0.0
    %484 = vmatpush1.msra.mxu0 0.0
    %485 = vmatprep.subr.mxu0 0.0
    %486 = vmatpush1.msra.mxu0 0.0
    %487 = vmatprep.subr.mxu0 0.0
    %488 = vmatpush1.msra.mxu0 0.0
    %489 = vmatprep.subr.mxu0 0.0
    %490 = vmatpush1.msra.mxu0 0.0
    %491 = vmatprep.subr.mxu0 0.0
    %492 = vmatpush1.msra.mxu0 0.0
    %493 = vmatprep.subr.mxu0 0.0
    %494 = vmatpush1.msra.mxu0 0.0
    %495 = vmatprep.subr.mxu0 0.0
    %496 = vmatpush1.msra.mxu0 0.0
    %497 = vmatprep.subr.mxu0 0.0
    %498 = vmatpush1.msra.mxu0 0.0
    %499 = vmatprep.subr.mxu0 0.0
    %500 = vmatpush1.msra.mxu0 0.0
    %501 = vmatprep.subr.mxu0 0.0
    %502 = vmatpush1.msra.mxu0 0.0
    %503 = vmatprep.subr.mxu0 0.0
    %504 = vmatpush1.msra.mxu0 0.0
    %505 = vmatprep.subr.mxu0 0.0
    %506 = vmatpush1.msra.mxu0 0.0
    %507 = vmatprep.subr.mxu0 0.0
    %508 = vmatpush1.msra.mxu0 0.0
    %509 = vmatprep.subr.mxu0 0.0
    %510 = vmatpush1.msra.mxu0 0.0
    %511 = vmatprep.subr.mxu0 0.0
    %512 = vmatpush1.msra.mxu0 0.0
    %513 = vmatprep.subr.mxu0 0.0
    %514 = vmatpush1.msra.mxu0 0.0
    %515 = vmatprep.subr.mxu0 0.0
    %516 = vmatpush1.msra.mxu0 0.0
    %517 = vmatprep.subr.mxu0 0.0
    %518 = vmatpush1.msra.mxu0 0.0
    %519 = vmatprep.subr.mxu0 0.0
    %520 = vmatpush1.msra.mxu0 0.0
    %521 = vmatprep.subr.mxu0 0.0
    %522 = vmatpush1.msra.mxu0 0.0
    %523 = vmatprep.subr.mxu0 0.0
    %524 = vmatpush1.msra.mxu0 0.0
    %525 = vmatprep.mubr.f32.mxu0 0.0
    %526 = vmatmul.mubr.f32.gmra.mrb[0].mxu0 %v459
    %v527 = vpop.f32.mrb[0].mxu0
    %v528 = vadd.f32 0.0, %v527
    %v529 = vpop.f32.mrb[0].mxu0
    %530 = vdwg.mxu0
    %v531 = vadd.f32 %v455, %v528
    %vm532 = vcmp.eq.s32.totalorder %v367, 63
    %v533 = vsel %vm532, 8.0, 0.0
    %v534 = vadd.f32 %v531, %v533
    %vm535 = vcmp.lt.s32.totalorder %v367, 32
    %v536 = vsel %vm535, %v534, 0.0
    %v537 = vsel %vm234, %v536, 0.0
    %538 = vadd.xlane.f32.xlu0 %v537
    %v539 = vpop.xlane.xlu0 %538
    %v540 = vsel %vm535, 0.0, %v534
    %v541 = vsel %vm234, %v540, 0.0
    %542 = vadd.xlane.f32.xlu0 %v541
    %v543 = vpop.xlane.xlu0 %542
    %v544 = vsel %vm535, %v539, %v543
    %v545 = vmul.f32 %v544, 0.03125
    %v546 = vsub.f32 %v534, %v545
    %v547 = vmul.f32 %v546, %v546
    %v548 = vsel %vm535, %v547, 0.0
    %v549 = vsel %vm234, %v548, 0.0
    %550 = vadd.xlane.f32.xlu0 %v549
    %v551 = vpop.xlane.xlu0 %550
    %v552 = vsel %vm535, 0.0, %v547
    %v553 = vsel %vm234, %v552, 0.0
    %554 = vadd.xlane.f32.xlu0 %v553
    %v555 = vpop.xlane.xlu0 %554
    %v556 = vsel %vm535, %v551, %v555
    %v557 = vmul.f32 %v556, 0.03125
    %v558 = vadd.f32 %v557, 1e-05
    %v559 = vrsqrt.pop %v558
    %v560 = vmul.f32 %v546, %v559
    %v561 = vlaneseq
    %v562 = vshrl.u32 %v561, 7
    %v563 = vsub.s32 0, %v562
    %v564 = vrot.slane %v71, %v563
    %v565 = vmul.f32 %v560, %v564
    %v566 = vlaneseq
    %v567 = vshrl.u32 %v566, 7
    %v568 = vsub.s32 0, %v567
    %v569 = vrot.slane %v72, %v568
    %v570 = vadd.f32 %v565, %v569
    %v571 = vmax.f32 %v570, 0.0
    %v572 = vlaneseq
    %v573 = vshrl.u32 %v572, 7
    %v574 = vsub.s32 0, %v573
    %v575 = vrot.slane %v73, %v574
    %v577 = vsel %vm234, %v571, 0
    %579 = vmatprep.subr.mxu0 0.0
    %580 = vmatpush1.msra.mxu0 %v44
    %581 = vmatprep.subr.mxu0 0.0
    %582 = vmatpush1.msra.mxu0 %v45
    %583 = vmatprep.subr.mxu0 0.0
    %584 = vmatpush1.msra.mxu0 %v46
    %585 = vmatprep.subr.mxu0 0.0
    %586 = vmatpush1.msra.mxu0 %v47
    %587 = vmatprep.subr.mxu0 0.0
    %588 = vmatpush1.msra.mxu0 %v48
    %589 = vmatprep.subr.mxu0 0.0
    %590 = vmatpush1.msra.mxu0 %v49
    %591 = vmatprep.subr.mxu0 0.0
    %592 = vmatpush1.msra.mxu0 %v50
    %593 = vmatprep.subr.mxu0 0.0
    %594 = vmatpush1.msra.mxu0 %v51
    %595 = vmatprep.subr.mxu0 0.0
    %596 = vmatpush1.msra.mxu0 0.0
    %597 = vmatprep.subr.mxu0 0.0
    %598 = vmatpush1.msra.mxu0 0.0
    %599 = vmatprep.subr.mxu0 0.0
    %600 = vmatpush1.msra.mxu0 0.0
    %601 = vmatprep.subr.mxu0 0.0
    %602 = vmatpush1.msra.mxu0 0.0
    %603 = vmatprep.subr.mxu0 0.0
    %604 = vmatpush1.msra.mxu0 0.0
    %605 = vmatprep.subr.mxu0 0.0
    %606 = vmatpush1.msra.mxu0 0.0
    %607 = vmatprep.subr.mxu0 0.0
    %608 = vmatpush1.msra.mxu0 0.0
    %609 = vmatprep.subr.mxu0 0.0
    %610 = vmatpush1.msra.mxu0 0.0
    %611 = vmatprep.subr.mxu0 0.0
    %612 = vmatpush1.msra.mxu0 0.0
    %613 = vmatprep.subr.mxu0 0.0
    %614 = vmatpush1.msra.mxu0 0.0
    %615 = vmatprep.subr.mxu0 0.0
    %616 = vmatpush1.msra.mxu0 0.0
    %617 = vmatprep.subr.mxu0 0.0
    %618 = vmatpush1.msra.mxu0 0.0
    %619 = vmatprep.subr.mxu0 0.0
    %620 = vmatpush1.msra.mxu0 0.0
    %621 = vmatprep.subr.mxu0 0.0
    %622 = vmatpush1.msra.mxu0 0.0
    %623 = vmatprep.subr.mxu0 0.0
    %624 = vmatpush1.msra.mxu0 0.0
    %625 = vmatprep.subr.mxu0 0.0
    %626 = vmatpush1.msra.mxu0 0.0
    %627 = vmatprep.subr.mxu0 0.0
    %628 = vmatpush1.msra.mxu0 0.0
    %629 = vmatprep.subr.mxu0 0.0
    %630 = vmatpush1.msra.mxu0 0.0
    %631 = vmatprep.subr.mxu0 0.0
    %632 = vmatpush1.msra.mxu0 0.0
    %633 = vmatprep.subr.mxu0 0.0
    %634 = vmatpush1.msra.mxu0 0.0
    %635 = vmatprep.subr.mxu0 0.0
    %636 = vmatpush1.msra.mxu0 0.0
    %637 = vmatprep.subr.mxu0 0.0
    %638 = vmatpush1.msra.mxu0 0.0
    %639 = vmatprep.subr.mxu0 0.0
    %640 = vmatpush1.msra.mxu0 0.0
    %641 = vmatprep.subr.mxu0 0.0
    %642 = vmatpush1.msra.mxu0 0.0
    %643 = vmatprep.mubr.f32.mxu0 0.0
    %644 = vmatmul.mubr.f32.gmra.mrb[0].mxu0 %v577
    %v645 = vpop.f32.mrb[0].mxu0
    %v646 = vadd.f32 %v575, %v645
    %v647 = vpop.f32.mrb[0].mxu0
    %648 = vdwg.mxu0
    %v649 = vld [vmem:[%s2] sm:$0x1]
    %v651 = vlaneseq
    %v652 = vshrl.u32 %v651, 7
    %v653 = vsub.s32 0, %v652
    %v654 = vrot.slane %v649, %v653
    %v656 = vadd.f32 %v646, %v654
    %v657 = vmax.f32 %v656, 0.0
    %v658 = vlaneseq
    %v659 = vshrl.u32 %v658, 7
    %v660 = vsub.s32 0, %v659
    %v661 = vrot.slane %v74, %v660
    %v663 = vsel %vm234, %v657, 0
    %665 = vmatprep.subr.mxu0 0.0
    %666 = vmatpush1.msra.mxu0 %v52
    %667 = vmatprep.subr.mxu0 0.0
    %668 = vmatpush1.msra.mxu0 %v53
    %669 = vmatprep.subr.mxu0 0.0
    %670 = vmatpush1.msra.mxu0 %v54
    %671 = vmatprep.subr.mxu0 0.0
    %672 = vmatpush1.msra.mxu0 %v55
    %673 = vmatprep.subr.mxu0 0.0
    %674 = vmatpush1.msra.mxu0 %v56
    %675 = vmatprep.subr.mxu0 0.0
    %676 = vmatpush1.msra.mxu0 %v57
    %677 = vmatprep.subr.mxu0 0.0
    %678 = vmatpush1.msra.mxu0 %v58
    %679 = vmatprep.subr.mxu0 0.0
    %680 = vmatpush1.msra.mxu0 %v59
    %681 = vmatprep.subr.mxu0 0.0
    %682 = vmatpush1.msra.mxu0 0.0
    %683 = vmatprep.subr.mxu0 0.0
    %684 = vmatpush1.msra.mxu0 0.0
    %685 = vmatprep.subr.mxu0 0.0
    %686 = vmatpush1.msra.mxu0 0.0
    %687 = vmatprep.subr.mxu0 0.0
    %688 = vmatpush1.msra.mxu0 0.0
    %689 = vmatprep.subr.mxu0 0.0
    %690 = vmatpush1.msra.mxu0 0.0
    %691 = vmatprep.subr.mxu0 0.0
    %692 = vmatpush1.msra.mxu0 0.0
    %693 = vmatprep.subr.mxu0 0.0
    %694 = vmatpush1.msra.mxu0 0.0
    %695 = vmatprep.subr.mxu0 0.0
    %696 = vmatpush1.msra.mxu0 0.0
    %697 = vmatprep.subr.mxu0 0.0
    %698 = vmatpush1.msra.mxu0 0.0
    %699 = vmatprep.subr.mxu0 0.0
    %700 = vmatpush1.msra.mxu0 0.0
    %701 = vmatprep.subr.mxu0 0.0
    %702 = vmatpush1.msra.mxu0 0.0
    %703 = vmatprep.subr.mxu0 0.0
    %704 = vmatpush1.msra.mxu0 0.0
    %705 = vmatprep.subr.mxu0 0.0
    %706 = vmatpush1.msra.mxu0 0.0
    %707 = vmatprep.subr.mxu0 0.0
    %708 = vmatpush1.msra.mxu0 0.0
    %709 = vmatprep.subr.mxu0 0.0
    %710 = vmatpush1.msra.mxu0 0.0
    %711 = vmatprep.subr.mxu0 0.0
    %712 = vmatpush1.msra.mxu0 0.0
    %713 = vmatprep.subr.mxu0 0.0
    %714 = vmatpush1.msra.mxu0 0.0
    %715 = vmatprep.subr.mxu0 0.0
    %716 = vmatpush1.msra.mxu0 0.0
    %717 = vmatprep.subr.mxu0 0.0
    %718 = vmatpush1.msra.mxu0 0.0
    %719 = vmatprep.subr.mxu0 0.0
    %720 = vmatpush1.msra.mxu0 0.0
    %721 = vmatprep.subr.mxu0 0.0
    %722 = vmatpush1.msra.mxu0 0.0
    %723 = vmatprep.subr.mxu0 0.0
    %724 = vmatpush1.msra.mxu0 0.0
    %725 = vmatprep.subr.mxu0 0.0
    %726 = vmatpush1.msra.mxu0 0.0
    %727 = vmatprep.subr.mxu0 0.0
    %728 = vmatpush1.msra.mxu0 0.0
    %729 = vmatprep.mubr.f32.mxu0 0.0
    %730 = vmatmul.mubr.f32.gmra.mrb[0].mxu0 %v663
    %v731 = vpop.f32.mrb[0].mxu0
    %v732 = vadd.f32 %v661, %v731
    %v733 = vpop.f32.mrb[0].mxu0
    %734 = vdwg.mxu0
    %v735 = vmax.f32 %v732, 0.0
    %v736 = vadd.f32 %v735, %v455
    %v737 = vlaneseq
    %v738 = vshrl.u32 %v737, 7
    %v739 = vsub.s32 0, %v738
    %v740 = vrot.slane %v75, %v739
    %v742 = vsel %vm234, %v736, 0
    %744 = vmatprep.subr.mxu0 0.0
    %745 = vmatpush1.msra.mxu0 %v60
    %746 = vmatprep.subr.mxu0 0.0
    %747 = vmatpush1.msra.mxu0 %v61
    %748 = vmatprep.subr.mxu0 0.0
    %749 = vmatpush1.msra.mxu0 %v62
    %750 = vmatprep.subr.mxu0 0.0
    %751 = vmatpush1.msra.mxu0 %v63
    %752 = vmatprep.subr.mxu0 0.0
    %753 = vmatpush1.msra.mxu0 %v64
    %754 = vmatprep.subr.mxu0 0.0
    %755 = vmatpush1.msra.mxu0 %v65
    %756 = vmatprep.subr.mxu0 0.0
    %757 = vmatpush1.msra.mxu0 %v66
    %758 = vmatprep.subr.mxu0 0.0
    %759 = vmatpush1.msra.mxu0 %v67
    %760 = vmatprep.subr.mxu0 0.0
    %761 = vmatpush1.msra.mxu0 0.0
    %762 = vmatprep.subr.mxu0 0.0
    %763 = vmatpush1.msra.mxu0 0.0
    %764 = vmatprep.subr.mxu0 0.0
    %765 = vmatpush1.msra.mxu0 0.0
    %766 = vmatprep.subr.mxu0 0.0
    %767 = vmatpush1.msra.mxu0 0.0
    %768 = vmatprep.subr.mxu0 0.0
    %769 = vmatpush1.msra.mxu0 0.0
    %770 = vmatprep.subr.mxu0 0.0
    %771 = vmatpush1.msra.mxu0 0.0
    %772 = vmatprep.subr.mxu0 0.0
    %773 = vmatpush1.msra.mxu0 0.0
    %774 = vmatprep.subr.mxu0 0.0
    %775 = vmatpush1.msra.mxu0 0.0
    %776 = vmatprep.subr.mxu0 0.0
    %777 = vmatpush1.msra.mxu0 0.0
    %778 = vmatprep.subr.mxu0 0.0
    %779 = vmatpush1.msra.mxu0 0.0
    %780 = vmatprep.subr.mxu0 0.0
    %781 = vmatpush1.msra.mxu0 0.0
    %782 = vmatprep.subr.mxu0 0.0
    %783 = vmatpush1.msra.mxu0 0.0
    %784 = vmatprep.subr.mxu0 0.0
    %785 = vmatpush1.msra.mxu0 0.0
    %786 = vmatprep.subr.mxu0 0.0
    %787 = vmatpush1.msra.mxu0 0.0
    %788 = vmatprep.subr.mxu0 0.0
    %789 = vmatpush1.msra.mxu0 0.0
    %790 = vmatprep.subr.mxu0 0.0
    %791 = vmatpush1.msra.mxu0 0.0
    %792 = vmatprep.subr.mxu0 0.0
    %793 = vmatpush1.msra.mxu0 0.0
    %794 = vmatprep.subr.mxu0 0.0
    %795 = vmatpush1.msra.mxu0 0.0
    %796 = vmatprep.subr.mxu0 0.0
    %797 = vmatpush1.msra.mxu0 0.0
    %798 = vmatprep.subr.mxu0 0.0
    %799 = vmatpush1.msra.mxu0 0.0
    %800 = vmatprep.subr.mxu0 0.0
    %801 = vmatpush1.msra.mxu0 0.0
    %802 = vmatprep.subr.mxu0 0.0
    %803 = vmatpush1.msra.mxu0 0.0
    %804 = vmatprep.subr.mxu0 0.0
    %805 = vmatpush1.msra.mxu0 0.0
    %806 = vmatprep.subr.mxu0 0.0
    %807 = vmatpush1.msra.mxu0 0.0
    %808 = vmatprep.mubr.f32.mxu0 0.0
    %809 = vmatmul.mubr.f32.gmra.mrb[0].mxu0 %v742
    %v810 = vpop.f32.mrb[0].mxu0
    %v811 = vadd.f32 %v740, %v810
    %v812 = vpop.f32.mrb[0].mxu0
    %813 = vdwg.mxu0
    %814 = vst.msk [vmem:[%s5] sm:$0xff] %vm380, %v811
    // Predicated region
    $region26: #{score_function_forward.1} parent=1 // pred_check
      _
    $region27: #{score_function_forward.1} parent=1 // pred_check_branch
      %816 = sbr.rel (0) target = $region29
    $region28: #{score_function_forward.1} parent=1 // pred_region
      _
    $region29: #{score_function_forward.1} parent=1 // pred_fallthru
      _
    // Predicated region
    $region30: #{score_function_forward.1} parent=1 // pred_check
      _
    $region31: #{score_function_forward.1} parent=1 // pred_check_branch
      %818 = sbr.rel (0) target = $region33
    $region32: #{score_function_forward.1} parent=1 // pred_region
      _
    $region33: #{score_function_forward.1} parent=1 // pred_fallthru
      _
    %819 = vsyncpa [#allocation3], 1

</llo_original>
